<compile_context>
chip_gen: v6e
topology: v6e:2x2x1
jax: 0.10.0
libtpu: 0.0.40
codegen_flags: <defaults>
</compile_context>

<pallas_src>
import functools

import jax
import jax.numpy as jnp
from jax.experimental import pallas as pl
from jax.experimental.pallas import tpu as pltpu


def _round_up(x, m):
    return ((x + m - 1) // m) * m


def _choose_hw_tile(hw, c_in, c_out, t_max=2048, vmem_budget=24 * 1024 * 1024):
    """Pick a lane tile for the pixel axis.

    Pads H*W only up to the next multiple of 128 (waste < 128 columns) and
    returns the largest multiple-of-128 tile <= t_max that divides the padded
    size and fits a conservative per-step VMEM budget (sized for v7x).
    Returns (tile, padded_hw).
    """
    hw_pad = _round_up(hw, 128)
    # Per-pixel-column VMEM bytes per grid step (rough, double-buffered I/O +
    # f32 temporaries for h and y inside the kernel):
    #   x tile (bf16, 2 bufs) + out tile (f32, 2 bufs) + h (f32) + y (f32+bf16)
    per_col = 2 * (2 * c_in) + 2 * (4 * c_out) + 4 * c_in + (4 + 2) * c_in + 4 * c_out
    t_cap = max(128, (vmem_budget // max(per_col, 1)) // 128 * 128)
    t_lim = min(t_max, t_cap, hw_pad)
    best = 128
    t = 128
    while t <= t_lim:
        if hw_pad % t == 0:
            best = t
        t += 128
    return best, hw_pad


# ----------------------------------------------------------------------------
# Kernel 1: per-tile BatchNorm statistics of h = W1 @ x_cols.
#   x tile:  (1, C_in, t_hw) bf16 (native NCHW layout, pixels on lanes)
#   output:  one lane-dense (2, C_in) block per tile: row 0 = sum(h),
#            row 1 = sum(h*h).  h itself is never written to HBM.
# ----------------------------------------------------------------------------
def _stats_kernel(x_ref, w1_ref, stat_ref):
    xb = x_ref[0]                                                 # (C_in, t_hw) bf16
    h = jnp.dot(w1_ref[...], xb, preferred_element_type=jnp.float32)
    # Transpose the (C_in, 1) reductions to (1, C_in) so the store is
    # lane-dense (C_in on lanes); XLU transpose is a free slot under the MXU.
    s = jnp.sum(h, axis=1, keepdims=True).T                       # (1, C_in)
    q = jnp.sum(h * h, axis=1, keepdims=True).T                   # (1, C_in)
    stat_ref[0, 0] = jnp.concatenate([s, q], axis=0)              # (2, C_in)


# ----------------------------------------------------------------------------
# Kernel 2: recompute h = W1 @ x_cols (bf16 MXU, f32 acc), apply folded BN
#           (h*scale + shift), ReLU, then out = W2 @ y + b2.  Output tile
#           (1, C_out, t_hw) is lane-dense on the pixel axis.
# ----------------------------------------------------------------------------
def _bn_relu_proj_kernel(x_ref, w1_ref, ss_ref, w2_ref, b2_ref, o_ref):
    xb = x_ref[0]                                                 # (C_in, t_hw) bf16
    h = jnp.dot(w1_ref[...], xb, preferred_element_type=jnp.float32)
    scale = ss_ref[:, 0:1]                                        # (C_in, 1) f32
    shift = ss_ref[:, 1:2]                                        # (C_in, 1) f32
    y = jnp.maximum(h * scale + shift, 0.0)                       # f32 elementwise
    out = jnp.dot(w2_ref[...], y.astype(jnp.bfloat16),
                  preferred_element_type=jnp.float32)
    o_ref[0] = (out + b2_ref[...]).astype(o_ref.dtype)            # (C_out, t_hw)


@functools.partial(jax.jit, static_argnames=("t_hw_max",))
def projection_mlp_forward(x, w1, w2, b2, gamma, beta, *, t_hw_max=2048, eps=1e-5):
    """x: [B, C_in, H, W] float32 (NCHW, matching the PyTorch module)."""
    B, C_in, H, W = x.shape
    C_out = w2.shape[0]
    HW = H * W
    N = B * HW  # true token count for BatchNorm statistics

    t_hw, HW_pad = _choose_hw_tile(HW, C_in, C_out, t_hw_max)
    n_t = HW_pad // t_hw
    grid = (B, n_t)

    # --- glue: merge trailing spatial dims (free), cast streamed operands ----
    # bf16 x: MXU-native operand + halves HBM traffic of x (read twice).
    x3 = x.reshape(B, C_in, HW).astype(jnp.bfloat16)
    if HW_pad != HW:
        # Zero pixels: h = W1 @ 0 = 0 contributes nothing to sum / sumsq.
        x3 = jnp.pad(x3, ((0, 0), (0, 0), (0, HW_pad - HW)))
    w1_b = w1.astype(jnp.bfloat16)
    w2_b = w2.astype(jnp.bfloat16)

    cparams = pltpu.CompilerParams(
        dimension_semantics=("parallel", "parallel"),
        vmem_limit_bytes=32 * 1024 * 1024,
    )

    # --- kernel 1: per-tile BN statistics (no h materialization) ------------
    stats = pl.pallas_call(
        _stats_kernel,
        out_shape=jax.ShapeDtypeStruct((B, n_t, 2, C_in), jnp.float32),
        grid_spec=pltpu.PrefetchScalarGridSpec(
            num_scalar_prefetch=0,
            grid=grid,
            in_specs=[
                pl.BlockSpec((1, C_in, t_hw), lambda b, j: (b, 0, j)),
                pl.BlockSpec((C_in, C_in), lambda b, j: (0, 0)),
            ],
            out_specs=pl.BlockSpec((1, 1, 2, C_in), lambda b, j: (b, j, 0, 0)),
        ),
        compiler_params=cparams,
    )(x3, w1_b)

    # --- glue: finalize training-mode BN stats and fold into scale/shift ----
    totals = jnp.sum(stats, axis=(0, 1))            # (2, C_in)
    mean = totals[0] / N
    # Single-pass E[h^2]-E[h]^2 in f32; clamp to >=0 against cancellation.
    # TODO(synk): switch to mean-shifted per-tile accumulation if |mean|>>std.
    var = jnp.maximum(totals[1] / N - mean * mean, 0.0)
    inv_std = jax.lax.rsqrt(var + eps)
    scale = gamma * inv_std
    shift = beta - mean * scale
    ss = jnp.stack([scale, shift], axis=1)          # (C_in, 2) f32
    b2_col = b2.reshape(C_out, 1)
    # TODO(synk): BatchNorm1d running_mean/running_var buffer updates are not
    # emitted (forward output only).

    # --- kernel 2: folded-BN + ReLU + linear_2, straight into NCHW layout ---
    out3 = pl.pallas_call(
        _bn_relu_proj_kernel,
        out_shape=jax.ShapeDtypeStruct((B, C_out, HW_pad), x.dtype),
        grid_spec=pltpu.PrefetchScalarGridSpec(
            num_scalar_prefetch=0,
            grid=grid,
            in_specs=[
                pl.BlockSpec((1, C_in, t_hw), lambda b, j: (b, 0, j)),
                pl.BlockSpec((C_in, C_in), lambda b, j: (0, 0)),
                pl.BlockSpec((C_in, 2), lambda b, j: (0, 0)),
                pl.BlockSpec((C_out, C_in), lambda b, j: (0, 0)),
                pl.BlockSpec((C_out, 1), lambda b, j: (0, 0)),
            ],
            out_specs=pl.BlockSpec((1, C_out, t_hw), lambda b, j: (b, 0, j)),
        ),
        compiler_params=cparams,
    )(x3, w1_b, ss, w2_b, b2_col)

    if HW_pad != HW:
        out3 = out3[:, :, :HW]
    return out3.reshape(B, C_out, H, W)


def _reference_forward(x, w1, w2, b2, gamma, beta, eps=1e-5):
    """Pure-JAX f32 reference of the PyTorch forward (training-mode BatchNorm1d)."""
    B, C_in, H, W = x.shape
    C_out = w2.shape[0]
    xf = jnp.transpose(x, (0, 2, 3, 1)).reshape(-1, C_in)
    h = xf @ w1.T
    mean = jnp.mean(h, axis=0, keepdims=True)
    var = jnp.mean((h - mean) ** 2, axis=0, keepdims=True)
    y = (h - mean) * jax.lax.rsqrt(var + eps) * gamma[None, :] + beta[None, :]
    y = jnp.maximum(y, 0.0)
    o = y @ w2.T + b2[None, :]
    return jnp.transpose(o.reshape(B, H, W, C_out), (0, 3, 1, 2))


if __name__ == "__main__":
    # Small but module-consistent shapes: input_feature_len=128, output=64.
    B, C_in, H, W = 2, 128, 8, 8
    C_out = 64

    key = jax.random.PRNGKey(0)
    k_x, k_w1, k_w2, k_b2, k_g, k_b = jax.random.split(key, 6)

    x = jax.random.normal(k_x, (B, C_in, H, W), dtype=jnp.float32)
    # Deterministic synthetic parameters (shapes from nn.Linear / BatchNorm1d).
    w1 = jax.random.normal(k_w1, (C_in, C_in), dtype=jnp.float32) * (1.0 / jnp.sqrt(C_in))
    w2 = jax.random.normal(k_w2, (C_out, C_in), dtype=jnp.float32) * (1.0 / jnp.sqrt(C_in))
    b2 = jax.random.normal(k_b2, (C_out,), dtype=jnp.float32) * 0.01
    gamma = 1.0 + 0.1 * jax.random.normal(k_g, (C_in,), dtype=jnp.float32)
    beta = 0.1 * jax.random.normal(k_b, (C_in,), dtype=jnp.float32)

    out = projection_mlp_forward(x, w1, w2, b2, gamma, beta)
    out = jax.block_until_ready(out)

    ref = _reference_forward(x, w1, w2, b2, gamma, beta)
    assert out.shape == (B, C_out, H, W)
    # Tolerance accounts for bf16 quantization of x / W1 / W2 MXU operands
    # (f32 accumulation and f32 BN/elementwise math retained).
    assert jnp.allclose(out, ref, atol=3e-2, rtol=3e-2), "mismatch vs reference"

    print("KERNEL_OK")
</pallas_src>

<mosaic_0001>
module attributes {stable_mosaic.version = 11 : i64} {
  func.func @_stats_kernel(%arg0: i32, %arg1: i32, %arg2: memref<1x128x128xbf16, #tpu.memory_space<vmem>>, %arg3: memref<128x128xbf16, #tpu.memory_space<vmem>>, %arg4: memref<1x1x2x128xf32, #tpu.memory_space<vmem>>) attributes {dimension_semantics = [#tpu.dimension_semantics<parallel>, #tpu.dimension_semantics<parallel>], iteration_bounds = array<i64: 2, 1>, scalar_prefetch = 0 : i64, scratch_operands = 0 : i64, tpu.core_type = #tpu.core_type<tc>, window_params = [{transform_indices = @transform_0, window_bounds = array<i64: 1, 128, 128>}, {pipeline_mode = #tpu.pipeline_mode<synchronous>, transform_indices = @transform_1, window_bounds = array<i64: 128, 128>}, {transform_indices = @transform_2, window_bounds = array<i64: 1, 1, 2, 128>}]} {
    %c0 = arith.constant 0 : index
    %c0_0 = arith.constant 0 : index
    %c0_1 = arith.constant 0 : index
    %0 = vector.load %arg2[%c0, %c0_0, %c0_1] : memref<1x128x128xbf16, #tpu.memory_space<vmem>>, vector<1x128x128xbf16>
    %1 = vector.shape_cast %0 : vector<1x128x128xbf16> to vector<128x128xbf16>
    %c0_2 = arith.constant 0 : index
    %c0_3 = arith.constant 0 : index
    %2 = vector.load %arg3[%c0_2, %c0_3] : memref<128x128xbf16, #tpu.memory_space<vmem>>, vector<128x128xbf16>
    %cst = arith.constant dense<0.000000e+00> : vector<128x128xf32>
    %3 = tpu.matmul %2, %1, %cst {dimension_numbers = #tpu.dot_dimension_numbers<[1], [0], [0], [1], [0, 0, 1, 1], [], []>} : vector<128x128xbf16>, vector<128x128xbf16>, vector<128x128xf32> -> vector<128x128xf32>
    %cst_4 = arith.constant dense<0.000000e+00> : vector<128xf32>
    %4 = vector.multi_reduction <add>, %3, %cst_4 [1] : vector<128x128xf32> to vector<128xf32>
    %5 = vector.shape_cast %4 : vector<128xf32> to vector<128x1xf32>
    %6 = tpu.transpose %5, [1, 0] : vector<128x1xf32> -> vector<1x128xf32>
    %7 = arith.mulf %3, %3 : vector<128x128xf32>
    %cst_5 = arith.constant dense<0.000000e+00> : vector<128xf32>
    %8 = vector.multi_reduction <add>, %7, %cst_5 [1] : vector<128x128xf32> to vector<128xf32>
    %9 = vector.shape_cast %8 : vector<128xf32> to vector<128x1xf32>
    %10 = tpu.transpose %9, [1, 0] : vector<128x1xf32> -> vector<1x128xf32>
    %11 = tpu.concatenate %6, %10 in 0 : vector<1x128xf32>, vector<1x128xf32> -> vector<2x128xf32>
    %c0_6 = arith.constant 0 : index
    %c0_7 = arith.constant 0 : index
    %c0_8 = arith.constant 0 : index
    %c0_9 = arith.constant 0 : index
    %12 = vector.load %arg4[%c0_6, %c0_7, %c0_8, %c0_9] : memref<1x1x2x128xf32, #tpu.memory_space<vmem>>, vector<1x1x2x128xf32>
    %13 = vector.shape_cast %12 : vector<1x1x2x128xf32> to vector<2x128xf32>
    %14 = vector.shape_cast %11 : vector<2x128xf32> to vector<1x1x2x128xf32>
    tpu.vector_store %arg4[%c0_6, %c0_7, %c0_8, %c0_9], %14 {strides = array<i32>} : memref<1x1x2x128xf32, #tpu.memory_space<vmem>>, vector<1x1x2x128xf32>,
    return
  }
  func.func @transform_0(%arg0: i32, %arg1: i32) -> (i32, i32, i32) {
    %c0_i32 = arith.constant 0 : i32
    %c0_i32_0 = arith.constant 0 : i32
    return %arg0, %c0_i32, %arg1 : i32, i32, i32
  }
  func.func @transform_1(%arg0: i32, %arg1: i32) -> (i32, i32) {
    %c0_i32 = arith.constant 0 : i32
    %c0_i32_0 = arith.constant 0 : i32
    %c0_i32_1 = arith.constant 0 : i32
    return %c0_i32, %c0_i32_0 : i32, i32
  }
  func.func @transform_2(%arg0: i32, %arg1: i32) -> (i32, i32, i32, i32) {
    %c0_i32 = arith.constant 0 : i32
    %c0_i32_0 = arith.constant 0 : i32
    %c0_i32_1 = arith.constant 0 : i32
    return %arg0, %arg1, %c0_i32, %c0_i32_0 : i32, i32, i32, i32
  }
}

module attributes {stable_mosaic.version = 11 : i64} {
  func.func @_bn_relu_proj_kernel(%arg0: i32, %arg1: i32, %arg2: memref<1x128x128xbf16, #tpu.memory_space<vmem>>, %arg3: memref<128x128xbf16, #tpu.memory_space<vmem>>, %arg4: memref<128x2xf32, #tpu.memory_space<vmem>>, %arg5: memref<64x128xbf16, #tpu.memory_space<vmem>>, %arg6: memref<64x1xf32, #tpu.memory_space<vmem>>, %arg7: memref<1x64x128xf32, #tpu.memory_space<vmem>>) attributes {dimension_semantics = [#tpu.dimension_semantics<parallel>, #tpu.dimension_semantics<parallel>], iteration_bounds = array<i64: 2, 1>, scalar_prefetch = 0 : i64, scratch_operands = 0 : i64, tpu.core_type = #tpu.core_type<tc>, window_params = [{transform_indices = @transform_0, window_bounds = array<i64: 1, 128, 128>}, {pipeline_mode = #tpu.pipeline_mode<synchronous>, transform_indices = @transform_1, window_bounds = array<i64: 128, 128>}, {pipeline_mode = #tpu.pipeline_mode<synchronous>, transform_indices = @transform_2, window_bounds = array<i64: 128, 2>}, {pipeline_mode = #tpu.pipeline_mode<synchronous>, transform_indices = @transform_3, window_bounds = array<i64: 64, 128>}, {pipeline_mode = #tpu.pipeline_mode<synchronous>, transform_indices = @transform_4, window_bounds = array<i64: 64, 1>}, {transform_indices = @transform_5, window_bounds = array<i64: 1, 64, 128>}]} {
    %c0 = arith.constant 0 : index
    %c0_0 = arith.constant 0 : index
    %c0_1 = arith.constant 0 : index
    %0 = vector.load %arg2[%c0, %c0_0, %c0_1] : memref<1x128x128xbf16, #tpu.memory_space<vmem>>, vector<1x128x128xbf16>
    %1 = vector.shape_cast %0 : vector<1x128x128xbf16> to vector<128x128xbf16>
    %c0_2 = arith.constant 0 : index
    %c0_3 = arith.constant 0 : index
    %2 = vector.load %arg3[%c0_2, %c0_3] : memref<128x128xbf16, #tpu.memory_space<vmem>>, vector<128x128xbf16>
    %cst = arith.constant dense<0.000000e+00> : vector<128x128xf32>
    %3 = tpu.matmul %2, %1, %cst {dimension_numbers = #tpu.dot_dimension_numbers<[1], [0], [0], [1], [0, 0, 1, 1], [], []>} : vector<128x128xbf16>, vector<128x128xbf16>, vector<128x128xf32> -> vector<128x128xf32>
    %c0_4 = arith.constant 0 : index
    %c0_5 = arith.constant 0 : index
    %4 = vector.load %arg4[%c0_4, %c0_5] : memref<128x2xf32, #tpu.memory_space<vmem>>, vector<128x1xf32>
    %c0_6 = arith.constant 0 : index
    %c1 = arith.constant 1 : index
    %5 = vector.load %arg4[%c0_6, %c1] : memref<128x2xf32, #tpu.memory_space<vmem>>, vector<128x1xf32>
    %6 = vector.broadcast %4 : vector<128x1xf32> to vector<128x128xf32>
    %7 = arith.mulf %3, %6 : vector<128x128xf32>
    %8 = vector.broadcast %5 : vector<128x1xf32> to vector<128x128xf32>
    %9 = arith.addf %7, %8 : vector<128x128xf32>
    %cst_7 = arith.constant 0.000000e+00 : f32
    %10 = vector.broadcast %cst_7 : f32 to vector<128x128xf32>
    %11 = arith.maximumf %9, %10 : vector<128x128xf32>
    %c0_8 = arith.constant 0 : index
    %c0_9 = arith.constant 0 : index
    %12 = vector.load %arg5[%c0_8, %c0_9] : memref<64x128xbf16, #tpu.memory_space<vmem>>, vector<64x128xbf16>
    %13 = arith.truncf %11 : vector<128x128xf32> to vector<128x128xbf16>
    %cst_10 = arith.constant dense<0.000000e+00> : vector<64x128xf32>
    %14 = tpu.matmul %12, %13, %cst_10 {dimension_numbers = #tpu.dot_dimension_numbers<[1], [0], [0], [1], [0, 0, 1, 1], [], []>} : vector<64x128xbf16>, vector<128x128xbf16>, vector<64x128xf32> -> vector<64x128xf32>
    %c0_11 = arith.constant 0 : index
    %c0_12 = arith.constant 0 : index
    %15 = vector.load %arg6[%c0_11, %c0_12] : memref<64x1xf32, #tpu.memory_space<vmem>>, vector<64x1xf32>
    %16 = vector.broadcast %15 : vector<64x1xf32> to vector<64x128xf32>
    %17 = arith.addf %14, %16 : vector<64x128xf32>
    %c0_13 = arith.constant 0 : index
    %c0_14 = arith.constant 0 : index
    %c0_15 = arith.constant 0 : index
    %18 = vector.load %arg7[%c0_13, %c0_14, %c0_15] : memref<1x64x128xf32, #tpu.memory_space<vmem>>, vector<1x64x128xf32>
    %19 = vector.shape_cast %18 : vector<1x64x128xf32> to vector<64x128xf32>
    %20 = vector.shape_cast %17 : vector<64x128xf32> to vector<1x64x128xf32>
    tpu.vector_store %arg7[%c0_13, %c0_14, %c0_15], %20 {strides = array<i32>} : memref<1x64x128xf32, #tpu.memory_space<vmem>>, vector<1x64x128xf32>,
    return
  }
  func.func @transform_0(%arg0: i32, %arg1: i32) -> (i32, i32, i32) {
    %c0_i32 = arith.constant 0 : i32
    %c0_i32_0 = arith.constant 0 : i32
    return %arg0, %c0_i32, %arg1 : i32, i32, i32
  }
  func.func @transform_1(%arg0: i32, %arg1: i32) -> (i32, i32) {
    %c0_i32 = arith.constant 0 : i32
    %c0_i32_0 = arith.constant 0 : i32
    %c0_i32_1 = arith.constant 0 : i32
    return %c0_i32, %c0_i32_0 : i32, i32
  }
  func.func @transform_2(%arg0: i32, %arg1: i32) -> (i32, i32) {
    %c0_i32 = arith.constant 0 : i32
    %c0_i32_0 = arith.constant 0 : i32
    %c0_i32_1 = arith.constant 0 : i32
    return %c0_i32, %c0_i32_0 : i32, i32
  }
  func.func @transform_3(%arg0: i32, %arg1: i32) -> (i32, i32) {
    %c0_i32 = arith.constant 0 : i32
    %c0_i32_0 = arith.constant 0 : i32
    %c0_i32_1 = arith.constant 0 : i32
    return %c0_i32, %c0_i32_0 : i32, i32
  }
  func.func @transform_4(%arg0: i32, %arg1: i32) -> (i32, i32) {
    %c0_i32 = arith.constant 0 : i32
    %c0_i32_0 = arith.constant 0 : i32
    %c0_i32_1 = arith.constant 0 : i32
    return %c0_i32, %c0_i32_0 : i32, i32
  }
  func.func @transform_5(%arg0: i32, %arg1: i32) -> (i32, i32, i32) {
    %c0_i32 = arith.constant 0 : i32
    %c0_i32_0 = arith.constant 0 : i32
    return %arg0, %c0_i32, %arg1 : i32, i32, i32
  }
}

</mosaic_0001>

<llo_original>
// kernel: projection_mlp_forward.2
$region0: #{projection_mlp_forward.2}
  #allocation0 [shape = 'u32[]', space=smem, size = 0x4, offset = 0x4, fixed_abs, tag = 'smem constant byte address 0x4 - core index']
  #allocation1 [shape = 'u32[144,128]{1,0:T(1,128)}', space=vmem, size = 0x12000, scoped, tag = 'internal scratch']
  %s0 = inlined_call_operand.vmem [shape: bf16[2,128,128], index: 0, kind: input, shape index: {}]
  %s1 = inlined_call_operand.vmem [shape: bf16[128,128], index: 1, kind: input, shape index: {}]
  %s2 = inlined_call_operand.vmem [shape: f32[2,1,2,128], index: 2, kind: output, shape index: {}]
  %s3 = sld [smem:[#allocation0]]
  $region41: #{projection_mlp_forward.2} parent=0
    _
  %s5 = ssub.s32 1, %s3
  %s6 = scalar_select 0, %s5, %s3
  loop: start=0, step=1, limit=4
  $region2: #{projection_mlp_forward.2} parent=0 // loop_pre_header
    _
  $region3: #{projection_mlp_forward.2} parent=0 // loop_header
    %s8 = sphi 0, %s12
    %p9 = scmp.ge.s32.totalorder %s8, 4
    %s15 = sphi 0, %s27
    %s16 = sphi 0, %s23
    %s17 = sphi 0, %s15
    %s18 = sphi 0, %s16
    %s19 = sphi 0, %s17
    %s20 = sphi 0, %s18
    %s32 = sphi 0, %s34
    %s35 = sphi 0, %s32
    %s36 = sphi 0, %s35
    %s52 = sphi 0, %s36
    %s56 = sphi 0, %s56
    %s58 = sphi 0, %s56
    %s59 = sphi 0, %s58
    %s73 = sphi 0, %s59
    %s81 = sphi 0, %s83
    %s84 = sphi 0, %s81
    %s85 = sphi 0, %s84
    %s101 = sphi 0, %s85
  $region4: #{projection_mlp_forward.2} parent=0 // loop_header_branch
    %11 = sbr.rel (%p9) target = $region8
  $region5: #{projection_mlp_forward.2} parent=0 // loop_body
    %s13 = ssub.s32 %s8, 1
    %s14 = ssub.s32 %s8, 2
    %s21 = sadd.s32 1, %s16
    %p22 = scmp.ge.s32.totalorder %s21, 1
    %s23 = scalar_select %p22, 0, %s21
    %s24 = sadd.s32 1, %s15
    %s25 = scalar_select %p22, %s24, %s15
    %p26 = scmp.ge.s32.totalorder %s25, 2
    %s27 = scalar_select %p26, 0, %s25
    %s28 = ssub.s32 %s15, %s27
    %s29 = ssub.s32 %s16, %s23
    %s30 = sor.u32 %s28, %s29
    %p31 = scmp.eq.s32.totalorder %s30, 0
    %s33 = sadd.s32 %s32, 1
    %s34 = scalar_select %p31, %s32, %s33
    %p37 = pneg %p31
    %p38 = scmp.eq.s32.totalorder %s8, 1
    %p39 = por %p37, %p38
    %p40 = scmp.ne.s32.totalorder %s32, %s35
    %p41 = scmp.eq.s32.totalorder %s8, 0
    %p42 = por %p40, %p41
    %p43 = scmp.ne.s32.totalorder %s32, %s35
    %p44 = scmp.eq.s32.totalorder %s13, 1
    %p45 = por %p43, %p44
    %p46 = scmp.ne.s32.totalorder %s35, %s36
    %p47 = scmp.eq.s32.totalorder %s13, 0
    %p48 = por %p46, %p47
    %p49 = scmp.ne.s32.totalorder %s35, %s36
    %p50 = scmp.eq.s32.totalorder %s14, 1
    %p51 = por %p49, %p50
    %p53 = scmp.ne.s32.totalorder %s36, %s52
    %p54 = scmp.eq.s32.totalorder %s14, 0
    %p55 = por %p53, %p54
    %s57 = sadd.s32 %s56, 1
    %p60 = scmp.eq.s32.totalorder %s8, 1
    %p61 = scmp.ne.s32.totalorder %s56, %s58
    %p62 = scmp.eq.s32.totalorder %s8, 0
    %p63 = por %p61, %p62
    %p64 = scmp.ne.s32.totalorder %s56, %s58
    %p65 = scmp.eq.s32.totalorder %s13, 1
    %p66 = por %p64, %p65
    %p67 = scmp.ne.s32.totalorder %s58, %s59
    %p68 = scmp.eq.s32.totalorder %s13, 0
    %p69 = por %p67, %p68
    %p70 = scmp.ne.s32.totalorder %s58, %s59
    %p71 = scmp.eq.s32.totalorder %s14, 1
    %p72 = por %p70, %p71
    %p74 = scmp.ne.s32.totalorder %s59, %s73
    %p75 = scmp.eq.s32.totalorder %s14, 0
    %p76 = por %p74, %p75
    %s77 = ssub.s32 %s15, %s27
    %s78 = ssub.s32 %s16, %s23
    %s79 = sor.u32 %s77, %s78
    %p80 = scmp.eq.s32.totalorder %s79, 0
    %s82 = sadd.s32 %s81, 1
    %s83 = scalar_select %p80, %s81, %s82
    %p86 = pneg %p80
    %p87 = scmp.eq.s32.totalorder %s8, 1
    %p88 = por %p86, %p87
    %p89 = scmp.ne.s32.totalorder %s81, %s84
    %p90 = scmp.eq.s32.totalorder %s8, 0
    %p91 = por %p89, %p90
    %p92 = scmp.ne.s32.totalorder %s81, %s84
    %p93 = scmp.eq.s32.totalorder %s13, 1
    %p94 = por %p92, %p93
    %p95 = scmp.ne.s32.totalorder %s84, %s85
    %p96 = scmp.eq.s32.totalorder %s13, 0
    %p97 = por %p95, %p96
    %p98 = scmp.ne.s32.totalorder %s84, %s85
    %p99 = scmp.eq.s32.totalorder %s14, 1
    %p100 = por %p98, %p99
    %p102 = scmp.ne.s32.totalorder %s85, %s101
    %p103 = scmp.eq.s32.totalorder %s14, 0
    %p104 = por %p102, %p103
    %p105 = scmp.le.s32.totalorder 1, %s8
    %p106 = scmp.lt.s32.totalorder %s8, 3
    %p107 = pnand %p105, %p106
    %p108 = pneg %p107
    // Predicated region
    $region9: #{projection_mlp_forward.2} parent=5 // pred_check
      _
    $region10: #{projection_mlp_forward.2} parent=5 // pred_check_branch
      %110 = sbr.rel (%p107) target = $region12
    $region11: #{projection_mlp_forward.2} parent=5 // pred_region
      %s111 = ssub.s32 %s8, 1
      // Predicated region
      $region13: #{projection_mlp_forward.2} parent=11 // pred_check
        %p112 = pneg %p69
      $region14: #{projection_mlp_forward.2} parent=11 // pred_check_branch
        %114 = sbr.rel (%p112) target = $region16
      $region15: #{projection_mlp_forward.2} parent=11 // pred_region
        _
      $region16: #{projection_mlp_forward.2} parent=11 // pred_fallthru
        _
    $region12: #{projection_mlp_forward.2} parent=5 // pred_fallthru
      _
    %p115 = scmp.lt.s32.totalorder %s8, 2
    // Predicated region
    $region17: #{projection_mlp_forward.2} parent=5 // pred_check
      %p116 = pneg %p115
    $region18: #{projection_mlp_forward.2} parent=5 // pred_check_branch
      %118 = sbr.rel (%p116) target = $region20
    $region19: #{projection_mlp_forward.2} parent=5 // pred_region
      // Predicated region
      $region21: #{projection_mlp_forward.2} parent=19 // pred_check
        %p119 = pneg %p42
      $region22: #{projection_mlp_forward.2} parent=19 // pred_check_branch
        %121 = sbr.rel (%p119) target = $region24
      $region23: #{projection_mlp_forward.2} parent=19 // pred_region
        %p122 = scmp.lt.s32.totalorder %s15, 1
        %s123 = scalar_select %p122, %s15, 1
        %p124 = scmp.lt.s32.totalorder %s16, 0
        %s125 = scalar_select %p124, %s16, 0
        %s126 = smul.addr %s123, 16
        %s127 = sadd.s32 %s125, %s126
        %s128 = smul.addr %s127, 4
        %s129 = scalar_lea.vmem %s0, %s128
      $region24: #{projection_mlp_forward.2} parent=19 // pred_fallthru
        _
    $region20: #{projection_mlp_forward.2} parent=5 // pred_fallthru
      _
    %p130 = scmp.le.s32.totalorder 1, %s8
    %p131 = scmp.lt.s32.totalorder %s8, 3
    %p132 = pnand %p130, %p131
    %p133 = pneg %p132
    // Predicated region
    $region25: #{projection_mlp_forward.2} parent=5 // pred_check
      _
    $region26: #{projection_mlp_forward.2} parent=5 // pred_check_branch
      %135 = sbr.rel (%p132) target = $region28
    $region27: #{projection_mlp_forward.2} parent=5 // pred_region
      %s136 = ssub.s32 %s8, 1
      %p137 = scmp.lt.s32.totalorder %s17, 1
      %s138 = scalar_select %p137, %s17, 1
      %p139 = scmp.lt.s32.totalorder %s18, 0
      %s140 = scalar_select %p139, %s18, 0
      %s141 = smul.addr %s138, 16
      %s142 = sadd.s32 %s140, %s141
      %s143 = smul.addr %s142, 4
      %s144 = scalar_lea.vmem %s0, %s143
      %p145 = pneg %p48
      %p146 = pneg %p45
      %p147 = pneg %p69
      %p148 = pneg %p66
      %p149 = pneg %p97
      %p150 = pneg %p94
      %p151 = scmp.lt.s32.totalorder %s17, 1
      %s152 = scalar_select %p151, %s17, 1
      %p153 = scmp.lt.s32.totalorder %s18, 0
      %s154 = scalar_select %p153, %s18, 0
      %s155 = sadd.s32 %s154, %s152
      %s156 = smul.addr %s155, 2
      %s157 = scalar_lea.vmem %s2, %s156
      %p158 = scmp.lt.s32.totalorder %s17, 1
      %s159 = scalar_select %p158, %s17, 1
      %p160 = scmp.lt.s32.totalorder %s18, 0
      %s161 = scalar_select %p160, %s18, 0
      %s162 = smul.addr %s159, 16
      %s163 = sadd.s32 %s161, %s162
      %s164 = smul.addr %s163, 4
      %s165 = scalar_lea.vmem %s0, %s164
      %p166 = scmp.lt.s32.totalorder %s17, 1
      %s167 = scalar_select %p166, %s17, 1
      %p168 = scmp.lt.s32.totalorder %s18, 0
      %s169 = scalar_select %p168, %s18, 0
      %s170 = sadd.s32 %s169, %s167
      %s171 = smul.addr %s170, 2
      %s172 = scalar_lea.vmem %s2, %s171
      %v174 = vld [vmem:[%s165] sm:$0xf]
      %v175 = vld [vmem:[%s165 + $0x4] sm:$0xf]
      %v176 = vld [vmem:[%s165 + $0x8] sm:$0xf]
      %v177 = vld [vmem:[%s165 + $0xc] sm:$0xf]
      %v178 = vld [vmem:[%s165 + $0x10] sm:$0xf]
      %v179 = vld [vmem:[%s165 + $0x14] sm:$0xf]
      %v180 = vld [vmem:[%s165 + $0x18] sm:$0xf]
      %v181 = vld [vmem:[%s165 + $0x1c] sm:$0xf]
      %v182 = vld [vmem:[%s165 + $0x20] sm:$0xf]
      %v183 = vld [vmem:[%s165 + $0x24] sm:$0xf]
      %v184 = vld [vmem:[%s165 + $0x28] sm:$0xf]
      %v185 = vld [vmem:[%s165 + $0x2c] sm:$0xf]
      %v186 = vld [vmem:[%s165 + $0x30] sm:$0xf]
      %v187 = vld [vmem:[%s165 + $0x34] sm:$0xf]
      %v188 = vld [vmem:[%s165 + $0x38] sm:$0xf]
      %v189 = vld [vmem:[%s165 + $0x3c] sm:$0xf]
      %v190 = vld [vmem:[%s1] sm:$0xf]
      %v191 = vld [vmem:[%s1 + $0x4] sm:$0xf]
      %v192 = vld [vmem:[%s1 + $0x8] sm:$0xf]
      %v193 = vld [vmem:[%s1 + $0xc] sm:$0xf]
      %v194 = vld [vmem:[%s1 + $0x10] sm:$0xf]
      %v195 = vld [vmem:[%s1 + $0x14] sm:$0xf]
      %v196 = vld [vmem:[%s1 + $0x18] sm:$0xf]
      %v197 = vld [vmem:[%s1 + $0x1c] sm:$0xf]
      %v198 = vld [vmem:[%s1 + $0x20] sm:$0xf]
      %v199 = vld [vmem:[%s1 + $0x24] sm:$0xf]
      %v200 = vld [vmem:[%s1 + $0x28] sm:$0xf]
      %v201 = vld [vmem:[%s1 + $0x2c] sm:$0xf]
      %v202 = vld [vmem:[%s1 + $0x30] sm:$0xf]
      %v203 = vld [vmem:[%s1 + $0x34] sm:$0xf]
      %v204 = vld [vmem:[%s1 + $0x38] sm:$0xf]
      %v205 = vld [vmem:[%s1 + $0x3c] sm:$0xf]
      %v222 = vunpack.c.l.b16 %v190
      %v223 = vunpack.c.l.b16 %v191
      %v224 = vunpack.c.l.b16 %v192
      %v225 = vunpack.c.l.b16 %v193
      %v226 = vunpack.c.l.b16 %v194
      %v227 = vunpack.c.l.b16 %v195
      %v228 = vunpack.c.l.b16 %v196
      %v229 = vunpack.c.l.b16 %v197
      %v230 = vunpack.c.l.b16 %v198
      %v231 = vunpack.c.l.b16 %v199
      %v232 = vunpack.c.l.b16 %v200
      %v233 = vunpack.c.l.b16 %v201
      %v234 = vunpack.c.l.b16 %v202
      %v235 = vunpack.c.l.b16 %v203
      %v236 = vunpack.c.l.b16 %v204
      %v237 = vunpack.c.l.b16 %v205
      %v238 = vpack.c.b16 %v223, %v222
      %v239 = vpack.c.b16 %v225, %v224
      %v240 = vpack.c.b16 %v227, %v226
      %v241 = vpack.c.b16 %v229, %v228
      %v242 = vpack.c.b16 %v231, %v230
      %v243 = vpack.c.b16 %v233, %v232
      %v244 = vpack.c.b16 %v235, %v234
      %v245 = vpack.c.b16 %v237, %v236
      %v270 = vunpack.c.l.b16 %v174
      %v271 = vunpack.c.l.b16 %v175
      %v272 = vunpack.c.l.b16 %v176
      %v273 = vunpack.c.l.b16 %v177
      %v274 = vunpack.c.l.b16 %v178
      %v275 = vunpack.c.l.b16 %v179
      %v276 = vunpack.c.l.b16 %v180
      %v277 = vunpack.c.l.b16 %v181
      %v278 = vunpack.c.l.b16 %v182
      %v279 = vunpack.c.l.b16 %v183
      %v280 = vunpack.c.l.b16 %v184
      %v281 = vunpack.c.l.b16 %v185
      %v282 = vunpack.c.l.b16 %v186
      %v283 = vunpack.c.l.b16 %v187
      %v284 = vunpack.c.l.b16 %v188
      %v285 = vunpack.c.l.b16 %v189
      %v286 = vpack.c.b16 %v271, %v270
      %v287 = vpack.c.b16 %v273, %v272
      %v288 = vpack.c.b16 %v275, %v274
      %v289 = vpack.c.b16 %v277, %v276
      %v290 = vpack.c.b16 %v279, %v278
      %v291 = vpack.c.b16 %v281, %v280
      %v292 = vpack.c.b16 %v283, %v282
      %v293 = vpack.c.b16 %v285, %v284
      %302 = vmatprep.subr.bf16.mxu0 0
      %303 = vmatpush1.bf16.msra.mxu0 %v293
      %304 = vmatprep.subr.bf16.mxu0 0
      %305 = vmatpush1.bf16.msra.mxu0 %v292
      %306 = vmatprep.subr.bf16.mxu0 0
      %307 = vmatpush1.bf16.msra.mxu0 %v291
      %308 = vmatprep.subr.bf16.mxu0 0
      %309 = vmatpush1.bf16.msra.mxu0 %v290
      %310 = vmatprep.subr.bf16.mxu0 0
      %311 = vmatpush1.bf16.msra.mxu0 %v289
      %312 = vmatprep.subr.bf16.mxu0 0
      %313 = vmatpush1.bf16.msra.mxu0 %v288
      %314 = vmatprep.subr.bf16.mxu0 0
      %315 = vmatpush1.bf16.msra.mxu0 %v287
      %316 = vmatprep.subr.bf16.mxu0 0
      %317 = vmatpush1.bf16.msra.mxu0 %v286
      %318 = vmatprep.subr.bf16.mxu0 0
      %319 = vmatpush2.bf16.msra.mxu0 0
      %320 = vmatprep.subr.bf16.mxu0 0
      %321 = vmatpush2.bf16.msra.mxu0 0
      %322 = vmatprep.subr.bf16.mxu0 0
      %323 = vmatpush2.bf16.msra.mxu0 0
      %324 = vmatprep.subr.bf16.mxu0 0
      %325 = vmatpush2.bf16.msra.mxu0 0
      %326 = vmatprep.subr.bf16.mxu0 0
      %327 = vmatpush2.bf16.msra.mxu0 0
      %328 = vmatprep.subr.bf16.mxu0 0
      %329 = vmatpush2.bf16.msra.mxu0 0
      %330 = vmatprep.subr.bf16.mxu0 0
      %331 = vmatpush2.bf16.msra.mxu0 0
      %332 = vmatprep.subr.bf16.mxu0 0
      %333 = vmatpush2.bf16.msra.mxu0 0
      %334 = vmatprep.mubr.bf16.mxu0 0
      %335 = vmatmul.mubr.bf16.gmra.mxu0 %v238
      %v336 = vpop.f32.mrf.mxu0
      %v337 = vadd.f32 0.0, %v336
      %v338 = vpop.f32.mrf.mxu0
      %v339 = vpop.f32.mrf.mxu0
      %v340 = vadd.f32 0.0, %v339
      %v341 = vpop.f32.mrf.mxu0
      %342 = vmatprep.mubr.bf16.mxu0 0
      %343 = vmatmul.mubr.bf16.gmra.mxu0 %v239
      %v344 = vpop.f32.mrf.mxu0
      %v345 = vadd.f32 0.0, %v344
      %v346 = vpop.f32.mrf.mxu0
      %v347 = vpop.f32.mrf.mxu0
      %v348 = vadd.f32 0.0, %v347
      %v349 = vpop.f32.mrf.mxu0
      %350 = vmatprep.mubr.bf16.mxu0 0
      %351 = vmatmul.mubr.bf16.gmra.mxu0 %v240
      %v352 = vpop.f32.mrf.mxu0
      %v353 = vadd.f32 0.0, %v352
      %v354 = vpop.f32.mrf.mxu0
      %v355 = vpop.f32.mrf.mxu0
      %v356 = vadd.f32 0.0, %v355
      %v357 = vpop.f32.mrf.mxu0
      %358 = vmatprep.mubr.bf16.mxu0 0
      %359 = vmatmul.mubr.bf16.gmra.mxu0 %v241
      %v360 = vpop.f32.mrf.mxu0
      %v361 = vadd.f32 0.0, %v360
      %v362 = vpop.f32.mrf.mxu0
      %v363 = vpop.f32.mrf.mxu0
      %v364 = vadd.f32 0.0, %v363
      %v365 = vpop.f32.mrf.mxu0
      %366 = vmatprep.mubr.bf16.mxu0 0
      %367 = vmatmul.mubr.bf16.gmra.mxu0 %v242
      %v368 = vpop.f32.mrf.mxu0
      %v369 = vadd.f32 0.0, %v368
      %v370 = vpop.f32.mrf.mxu0
      %v371 = vpop.f32.mrf.mxu0
      %v372 = vadd.f32 0.0, %v371
      %v373 = vpop.f32.mrf.mxu0
      %374 = vmatprep.mubr.bf16.mxu0 0
      %375 = vmatmul.mubr.bf16.gmra.mxu0 %v243
      %v376 = vpop.f32.mrf.mxu0
      %v377 = vadd.f32 0.0, %v376
      %v378 = vpop.f32.mrf.mxu0
      %v379 = vpop.f32.mrf.mxu0
      %v380 = vadd.f32 0.0, %v379
      %v381 = vpop.f32.mrf.mxu0
      %382 = vmatprep.mubr.bf16.mxu0 0
      %383 = vmatmul.mubr.bf16.gmra.mxu0 %v244
      %v384 = vpop.f32.mrf.mxu0
      %v385 = vadd.f32 0.0, %v384
      %v386 = vpop.f32.mrf.mxu0
      %v387 = vpop.f32.mrf.mxu0
      %v388 = vadd.f32 0.0, %v387
      %v389 = vpop.f32.mrf.mxu0
      %390 = vmatprep.mubr.bf16.mxu0 0
      %391 = vmatmul.mubr.bf16.gmra.mxu0 %v245
      %v392 = vpop.f32.mrf.mxu0
      %v393 = vadd.f32 0.0, %v392
      %v394 = vpop.f32.mrf.mxu0
      %v395 = vpop.f32.mrf.mxu0
      %v396 = vadd.f32 0.0, %v395
      %v397 = vpop.f32.mrf.mxu0
      %398 = vdwg.mxu0
      %399 = vadd.xlane.f32.xlu0 %v337
      %v400 = vpop.xlane.xlu0 %399
      %401 = vadd.xlane.f32.xlu0 %v340
      %v402 = vpop.xlane.xlu0 %401
      %403 = vadd.xlane.f32.xlu0 %v345
      %v404 = vpop.xlane.xlu0 %403
      %405 = vadd.xlane.f32.xlu0 %v348
      %v406 = vpop.xlane.xlu0 %405
      %407 = vadd.xlane.f32.xlu0 %v353
      %v408 = vpop.xlane.xlu0 %407
      %409 = vadd.xlane.f32.xlu0 %v356
      %v410 = vpop.xlane.xlu0 %409
      %411 = vadd.xlane.f32.xlu0 %v361
      %v412 = vpop.xlane.xlu0 %411
      %413 = vadd.xlane.f32.xlu0 %v364
      %v414 = vpop.xlane.xlu0 %413
      %415 = vadd.xlane.f32.xlu0 %v369
      %v416 = vpop.xlane.xlu0 %415
      %417 = vadd.xlane.f32.xlu0 %v372
      %v418 = vpop.xlane.xlu0 %417
      %419 = vadd.xlane.f32.xlu0 %v377
      %v420 = vpop.xlane.xlu0 %419
      %421 = vadd.xlane.f32.xlu0 %v380
      %v422 = vpop.xlane.xlu0 %421
      %423 = vadd.xlane.f32.xlu0 %v385
      %v424 = vpop.xlane.xlu0 %423
      %425 = vadd.xlane.f32.xlu0 %v388
      %v426 = vpop.xlane.xlu0 %425
      %427 = vadd.xlane.f32.xlu0 %v393
      %v428 = vpop.xlane.xlu0 %427
      %429 = vadd.xlane.f32.xlu0 %v396
      %v430 = vpop.xlane.xlu0 %429
      %431 = vxpose.xlu0.b32.start [1/16] %v400, 128
      %432 = vxpose.xlu0.b32.cont [2/16] %v402, 128
      %433 = vxpose.xlu0.b32.cont [3/16] %v404, 128
      %434 = vxpose.xlu0.b32.cont [4/16] %v406, 128
      %435 = vxpose.xlu0.b32.cont [5/16] %v408, 128
      %436 = vxpose.xlu0.b32.cont [6/16] %v410, 128
      %437 = vxpose.xlu0.b32.cont [7/16] %v412, 128
      %438 = vxpose.xlu0.b32.cont [8/16] %v414, 128
      %439 = vxpose.xlu0.b32.cont [9/16] %v416, 128
      %440 = vxpose.xlu0.b32.cont [10/16] %v418, 128
      %441 = vxpose.xlu0.b32.cont [11/16] %v420, 128
      %442 = vxpose.xlu0.b32.cont [12/16] %v422, 128
      %443 = vxpose.xlu0.b32.cont [13/16] %v424, 128
      %444 = vxpose.xlu0.b32.cont [14/16] %v426, 128
      %445 = vxpose.xlu0.b32.cont [15/16] %v428, 128
      %446 = vxpose.xlu0.b32.end [16/16] %v430, 128
      %v447 = vpop.trf.xlu0
      %v448 = vpop.trf.xlu0
      %v449 = vpop.trf.xlu0
      %v450 = vpop.trf.xlu0
      %v451 = vpop.trf.xlu0
      %v452 = vpop.trf.xlu0
      %v453 = vpop.trf.xlu0
      %v454 = vpop.trf.xlu0
      %v455 = vpop.trf.xlu0
      %v456 = vpop.trf.xlu0
      %v457 = vpop.trf.xlu0
      %v458 = vpop.trf.xlu0
      %v459 = vpop.trf.xlu0
      %v460 = vpop.trf.xlu0
      %v461 = vpop.trf.xlu0
      %v462 = vpop.trf.xlu0
      %v463 = vmul.f32 %v337, %v337
      %v464 = vmul.f32 %v340, %v340
      %v465 = vmul.f32 %v345, %v345
      %v466 = vmul.f32 %v348, %v348
      %v467 = vmul.f32 %v353, %v353
      %v468 = vmul.f32 %v356, %v356
      %v469 = vmul.f32 %v361, %v361
      %v470 = vmul.f32 %v364, %v364
      %v471 = vmul.f32 %v369, %v369
      %v472 = vmul.f32 %v372, %v372
      %v473 = vmul.f32 %v377, %v377
      %v474 = vmul.f32 %v380, %v380
      %v475 = vmul.f32 %v385, %v385
      %v476 = vmul.f32 %v388, %v388
      %v477 = vmul.f32 %v393, %v393
      %v478 = vmul.f32 %v396, %v396
      %479 = vadd.xlane.f32.xlu0 %v463
      %v480 = vpop.xlane.xlu0 %479
      %481 = vadd.xlane.f32.xlu0 %v464
      %v482 = vpop.xlane.xlu0 %481
      %483 = vadd.xlane.f32.xlu0 %v465
      %v484 = vpop.xlane.xlu0 %483
      %485 = vadd.xlane.f32.xlu0 %v466
      %v486 = vpop.xlane.xlu0 %485
      %487 = vadd.xlane.f32.xlu0 %v467
      %v488 = vpop.xlane.xlu0 %487
      %489 = vadd.xlane.f32.xlu0 %v468
      %v490 = vpop.xlane.xlu0 %489
      %491 = vadd.xlane.f32.xlu0 %v469
      %v492 = vpop.xlane.xlu0 %491
      %493 = vadd.xlane.f32.xlu0 %v470
      %v494 = vpop.xlane.xlu0 %493
      %495 = vadd.xlane.f32.xlu0 %v471
      %v496 = vpop.xlane.xlu0 %495
      %497 = vadd.xlane.f32.xlu0 %v472
      %v498 = vpop.xlane.xlu0 %497
      %499 = vadd.xlane.f32.xlu0 %v473
      %v500 = vpop.xlane.xlu0 %499
      %501 = vadd.xlane.f32.xlu0 %v474
      %v502 = vpop.xlane.xlu0 %501
      %503 = vadd.xlane.f32.xlu0 %v475
      %v504 = vpop.xlane.xlu0 %503
      %505 = vadd.xlane.f32.xlu0 %v476
      %v506 = vpop.xlane.xlu0 %505
      %507 = vadd.xlane.f32.xlu0 %v477
      %v508 = vpop.xlane.xlu0 %507
      %509 = vadd.xlane.f32.xlu0 %v478
      %v510 = vpop.xlane.xlu0 %509
      %511 = vxpose.xlu0.b32.start [1/16] %v480, 128
      %512 = vxpose.xlu0.b32.cont [2/16] %v482, 128
      %513 = vxpose.xlu0.b32.cont [3/16] %v484, 128
      %514 = vxpose.xlu0.b32.cont [4/16] %v486, 128
      %515 = vxpose.xlu0.b32.cont [5/16] %v488, 128
      %516 = vxpose.xlu0.b32.cont [6/16] %v490, 128
      %517 = vxpose.xlu0.b32.cont [7/16] %v492, 128
      %518 = vxpose.xlu0.b32.cont [8/16] %v494, 128
      %519 = vxpose.xlu0.b32.cont [9/16] %v496, 128
      %520 = vxpose.xlu0.b32.cont [10/16] %v498, 128
      %521 = vxpose.xlu0.b32.cont [11/16] %v500, 128
      %522 = vxpose.xlu0.b32.cont [12/16] %v502, 128
      %523 = vxpose.xlu0.b32.cont [13/16] %v504, 128
      %524 = vxpose.xlu0.b32.cont [14/16] %v506, 128
      %525 = vxpose.xlu0.b32.cont [15/16] %v508, 128
      %526 = vxpose.xlu0.b32.end [16/16] %v510, 128
      %v527 = vpop.trf.xlu0
      %v528 = vpop.trf.xlu0
      %v529 = vpop.trf.xlu0
      %v530 = vpop.trf.xlu0
      %v531 = vpop.trf.xlu0
      %v532 = vpop.trf.xlu0
      %v533 = vpop.trf.xlu0
      %v534 = vpop.trf.xlu0
      %v535 = vpop.trf.xlu0
      %v536 = vpop.trf.xlu0
      %v537 = vpop.trf.xlu0
      %v538 = vpop.trf.xlu0
      %v539 = vpop.trf.xlu0
      %v540 = vpop.trf.xlu0
      %v541 = vpop.trf.xlu0
      %v542 = vpop.trf.xlu0
      %v544 = vrot.slane %v527, 7
      %vm546 = vcmask 1040384
      %v547 = vsel %vm546, %v447, %v544
      %548 = vst [vmem:[%s172] sm:$0x3] %v547
      %p549 = scmp.lt.s32.totalorder %s17, 1
      %s550 = scalar_select %p549, %s17, 1
      %p551 = scmp.lt.s32.totalorder %s18, 0
      %s552 = scalar_select %p551, %s18, 0
      %s553 = sadd.s32 %s552, %s550
      %s554 = smul.addr %s553, 2
      %s555 = scalar_lea.vmem %s2, %s554
      // Predicated region
      $region29: #{projection_mlp_forward.2} parent=27 // pred_check
        %p556 = pneg %p94
      $region30: #{projection_mlp_forward.2} parent=27 // pred_check_branch
        %558 = sbr.rel (%p556) target = $region32
      $region31: #{projection_mlp_forward.2} parent=27 // pred_region
        _
      $region32: #{projection_mlp_forward.2} parent=27 // pred_fallthru
        _
    $region28: #{projection_mlp_forward.2} parent=5 // pred_fallthru
      _
    %p559 = scmp.le.s32.totalorder 2, %s8
    // Predicated region
    $region33: #{projection_mlp_forward.2} parent=5 // pred_check
      %p560 = pneg %p559
    $region34: #{projection_mlp_forward.2} parent=5 // pred_check_branch
      %562 = sbr.rel (%p560) target = $region36
    $region35: #{projection_mlp_forward.2} parent=5 // pred_region
      %s563 = ssub.s32 %s8, 2
      // Predicated region
      $region37: #{projection_mlp_forward.2} parent=35 // pred_check
        %p564 = pneg %p100
      $region38: #{projection_mlp_forward.2} parent=35 // pred_check_branch
        %566 = sbr.rel (%p564) target = $region40
      $region39: #{projection_mlp_forward.2} parent=35 // pred_region
        %p567 = scmp.lt.s32.totalorder %s19, 1
        %s568 = scalar_select %p567, %s19, 1
        %p569 = scmp.lt.s32.totalorder %s20, 0
        %s570 = scalar_select %p569, %s20, 0
        %s571 = sadd.s32 %s570, %s568
        %s572 = smul.addr %s571, 2
        %s573 = scalar_lea.vmem %s2, %s572
      $region40: #{projection_mlp_forward.2} parent=35 // pred_fallthru
        _
    $region36: #{projection_mlp_forward.2} parent=5 // pred_fallthru
      _
  $region6: #{projection_mlp_forward.2} parent=0 // loop_footer
    %s12 = sadd.s32 1, %s8
  $region7: #{projection_mlp_forward.2} parent=0 // loop_footer_branch
    %7 = sbr.rel target = $region3
  $region8: #{projection_mlp_forward.2} parent=0 // loop_exit
    _

// kernel: projection_mlp_forward.3
$region0: #{projection_mlp_forward.3}
  #allocation0 [shape = 'u32[]', space=smem, size = 0x4, offset = 0x4, fixed_abs, tag = 'smem constant byte address 0x4 - core index']
  #allocation1 [shape = 'u32[144,128]{1,0:T(1,128)}', space=vmem, size = 0x12000, scoped, tag = 'internal scratch']
  %s0 = inlined_call_operand.vmem [shape: bf16[2,128,128], index: 0, kind: input, shape index: {}]
  %s1 = inlined_call_operand.vmem [shape: bf16[128,128], index: 1, kind: input, shape index: {}]
  %s2 = inlined_call_operand.vmem [shape: f32[128,2], index: 2, kind: input, shape index: {}]
  %s3 = inlined_call_operand.vmem [shape: bf16[64,128], index: 3, kind: input, shape index: {}]
  %s4 = inlined_call_operand.vmem [shape: f32[64,1], index: 4, kind: input, shape index: {}]
  %s5 = inlined_call_operand.vmem [shape: f32[2,64,128], index: 5, kind: output, shape index: {}]
  %s6 = sld [smem:[#allocation0]]
  $region53: #{projection_mlp_forward.3} parent=0
    _
  %s8 = ssub.s32 1, %s6
  %s9 = scalar_select 0, %s8, %s6
  loop: start=0, step=1, limit=4
  $region2: #{projection_mlp_forward.3} parent=0 // loop_pre_header
    _
  $region3: #{projection_mlp_forward.3} parent=0 // loop_header
    %s11 = sphi 0, %s15
    %p12 = scmp.ge.s32.totalorder %s11, 4
    %s18 = sphi 0, %s30
    %s19 = sphi 0, %s26
    %s20 = sphi 0, %s18
    %s21 = sphi 0, %s19
    %s22 = sphi 0, %s20
    %s23 = sphi 0, %s21
    %s35 = sphi 0, %s37
    %s38 = sphi 0, %s35
    %s39 = sphi 0, %s38
    %s55 = sphi 0, %s39
    %s59 = sphi 0, %s59
    %s61 = sphi 0, %s59
    %s62 = sphi 0, %s61
    %s76 = sphi 0, %s62
    %s80 = sphi 0, %s80
    %s82 = sphi 0, %s80
    %s83 = sphi 0, %s82
    %s97 = sphi 0, %s83
    %s101 = sphi 0, %s101
    %s103 = sphi 0, %s101
    %s104 = sphi 0, %s103
    %s118 = sphi 0, %s104
    %s122 = sphi 0, %s122
    %s124 = sphi 0, %s122
    %s125 = sphi 0, %s124
    %s139 = sphi 0, %s125
    %s147 = sphi 0, %s149
    %s150 = sphi 0, %s147
    %s151 = sphi 0, %s150
    %s167 = sphi 0, %s151
  $region4: #{projection_mlp_forward.3} parent=0 // loop_header_branch
    %14 = sbr.rel (%p12) target = $region8
  $region5: #{projection_mlp_forward.3} parent=0 // loop_body
    %s16 = ssub.s32 %s11, 1
    %s17 = ssub.s32 %s11, 2
    %s24 = sadd.s32 1, %s19
    %p25 = scmp.ge.s32.totalorder %s24, 1
    %s26 = scalar_select %p25, 0, %s24
    %s27 = sadd.s32 1, %s18
    %s28 = scalar_select %p25, %s27, %s18
    %p29 = scmp.ge.s32.totalorder %s28, 2
    %s30 = scalar_select %p29, 0, %s28
    %s31 = ssub.s32 %s18, %s30
    %s32 = ssub.s32 %s19, %s26
    %s33 = sor.u32 %s31, %s32
    %p34 = scmp.eq.s32.totalorder %s33, 0
    %s36 = sadd.s32 %s35, 1
    %s37 = scalar_select %p34, %s35, %s36
    %p40 = pneg %p34
    %p41 = scmp.eq.s32.totalorder %s11, 1
    %p42 = por %p40, %p41
    %p43 = scmp.ne.s32.totalorder %s35, %s38
    %p44 = scmp.eq.s32.totalorder %s11, 0
    %p45 = por %p43, %p44
    %p46 = scmp.ne.s32.totalorder %s35, %s38
    %p47 = scmp.eq.s32.totalorder %s16, 1
    %p48 = por %p46, %p47
    %p49 = scmp.ne.s32.totalorder %s38, %s39
    %p50 = scmp.eq.s32.totalorder %s16, 0
    %p51 = por %p49, %p50
    %p52 = scmp.ne.s32.totalorder %s38, %s39
    %p53 = scmp.eq.s32.totalorder %s17, 1
    %p54 = por %p52, %p53
    %p56 = scmp.ne.s32.totalorder %s39, %s55
    %p57 = scmp.eq.s32.totalorder %s17, 0
    %p58 = por %p56, %p57
    %s60 = sadd.s32 %s59, 1
    %p63 = scmp.eq.s32.totalorder %s11, 1
    %p64 = scmp.ne.s32.totalorder %s59, %s61
    %p65 = scmp.eq.s32.totalorder %s11, 0
    %p66 = por %p64, %p65
    %p67 = scmp.ne.s32.totalorder %s59, %s61
    %p68 = scmp.eq.s32.totalorder %s16, 1
    %p69 = por %p67, %p68
    %p70 = scmp.ne.s32.totalorder %s61, %s62
    %p71 = scmp.eq.s32.totalorder %s16, 0
    %p72 = por %p70, %p71
    %p73 = scmp.ne.s32.totalorder %s61, %s62
    %p74 = scmp.eq.s32.totalorder %s17, 1
    %p75 = por %p73, %p74
    %p77 = scmp.ne.s32.totalorder %s62, %s76
    %p78 = scmp.eq.s32.totalorder %s17, 0
    %p79 = por %p77, %p78
    %s81 = sadd.s32 %s80, 1
    %p84 = scmp.eq.s32.totalorder %s11, 1
    %p85 = scmp.ne.s32.totalorder %s80, %s82
    %p86 = scmp.eq.s32.totalorder %s11, 0
    %p87 = por %p85, %p86
    %p88 = scmp.ne.s32.totalorder %s80, %s82
    %p89 = scmp.eq.s32.totalorder %s16, 1
    %p90 = por %p88, %p89
    %p91 = scmp.ne.s32.totalorder %s82, %s83
    %p92 = scmp.eq.s32.totalorder %s16, 0
    %p93 = por %p91, %p92
    %p94 = scmp.ne.s32.totalorder %s82, %s83
    %p95 = scmp.eq.s32.totalorder %s17, 1
    %p96 = por %p94, %p95
    %p98 = scmp.ne.s32.totalorder %s83, %s97
    %p99 = scmp.eq.s32.totalorder %s17, 0
    %p100 = por %p98, %p99
    %s102 = sadd.s32 %s101, 1
    %p105 = scmp.eq.s32.totalorder %s11, 1
    %p106 = scmp.ne.s32.totalorder %s101, %s103
    %p107 = scmp.eq.s32.totalorder %s11, 0
    %p108 = por %p106, %p107
    %p109 = scmp.ne.s32.totalorder %s101, %s103
    %p110 = scmp.eq.s32.totalorder %s16, 1
    %p111 = por %p109, %p110
    %p112 = scmp.ne.s32.totalorder %s103, %s104
    %p113 = scmp.eq.s32.totalorder %s16, 0
    %p114 = por %p112, %p113
    %p115 = scmp.ne.s32.totalorder %s103, %s104
    %p116 = scmp.eq.s32.totalorder %s17, 1
    %p117 = por %p115, %p116
    %p119 = scmp.ne.s32.totalorder %s104, %s118
    %p120 = scmp.eq.s32.totalorder %s17, 0
    %p121 = por %p119, %p120
    %s123 = sadd.s32 %s122, 1
    %p126 = scmp.eq.s32.totalorder %s11, 1
    %p127 = scmp.ne.s32.totalorder %s122, %s124
    %p128 = scmp.eq.s32.totalorder %s11, 0
    %p129 = por %p127, %p128
    %p130 = scmp.ne.s32.totalorder %s122, %s124
    %p131 = scmp.eq.s32.totalorder %s16, 1
    %p132 = por %p130, %p131
    %p133 = scmp.ne.s32.totalorder %s124, %s125
    %p134 = scmp.eq.s32.totalorder %s16, 0
    %p135 = por %p133, %p134
    %p136 = scmp.ne.s32.totalorder %s124, %s125
    %p137 = scmp.eq.s32.totalorder %s17, 1
    %p138 = por %p136, %p137
    %p140 = scmp.ne.s32.totalorder %s125, %s139
    %p141 = scmp.eq.s32.totalorder %s17, 0
    %p142 = por %p140, %p141
    %s143 = ssub.s32 %s18, %s30
    %s144 = ssub.s32 %s19, %s26
    %s145 = sor.u32 %s143, %s144
    %p146 = scmp.eq.s32.totalorder %s145, 0
    %s148 = sadd.s32 %s147, 1
    %s149 = scalar_select %p146, %s147, %s148
    %p152 = pneg %p146
    %p153 = scmp.eq.s32.totalorder %s11, 1
    %p154 = por %p152, %p153
    %p155 = scmp.ne.s32.totalorder %s147, %s150
    %p156 = scmp.eq.s32.totalorder %s11, 0
    %p157 = por %p155, %p156
    %p158 = scmp.ne.s32.totalorder %s147, %s150
    %p159 = scmp.eq.s32.totalorder %s16, 1
    %p160 = por %p158, %p159
    %p161 = scmp.ne.s32.totalorder %s150, %s151
    %p162 = scmp.eq.s32.totalorder %s16, 0
    %p163 = por %p161, %p162
    %p164 = scmp.ne.s32.totalorder %s150, %s151
    %p165 = scmp.eq.s32.totalorder %s17, 1
    %p166 = por %p164, %p165
    %p168 = scmp.ne.s32.totalorder %s151, %s167
    %p169 = scmp.eq.s32.totalorder %s17, 0
    %p170 = por %p168, %p169
    %p171 = scmp.le.s32.totalorder 1, %s11
    %p172 = scmp.lt.s32.totalorder %s11, 3
    %p173 = pnand %p171, %p172
    %p174 = pneg %p173
    // Predicated region
    $region9: #{projection_mlp_forward.3} parent=5 // pred_check
      _
    $region10: #{projection_mlp_forward.3} parent=5 // pred_check_branch
      %176 = sbr.rel (%p173) target = $region12
    $region11: #{projection_mlp_forward.3} parent=5 // pred_region
      %s177 = ssub.s32 %s11, 1
      // Predicated region
      $region13: #{projection_mlp_forward.3} parent=11 // pred_check
        %p178 = pneg %p72
      $region14: #{projection_mlp_forward.3} parent=11 // pred_check_branch
        %180 = sbr.rel (%p178) target = $region16
      $region15: #{projection_mlp_forward.3} parent=11 // pred_region
        _
      $region16: #{projection_mlp_forward.3} parent=11 // pred_fallthru
        _
      // Predicated region
      $region17: #{projection_mlp_forward.3} parent=11 // pred_check
        %p181 = pneg %p93
      $region18: #{projection_mlp_forward.3} parent=11 // pred_check_branch
        %183 = sbr.rel (%p181) target = $region20
      $region19: #{projection_mlp_forward.3} parent=11 // pred_region
        _
      $region20: #{projection_mlp_forward.3} parent=11 // pred_fallthru
        _
      // Predicated region
      $region21: #{projection_mlp_forward.3} parent=11 // pred_check
        %p184 = pneg %p114
      $region22: #{projection_mlp_forward.3} parent=11 // pred_check_branch
        %186 = sbr.rel (%p184) target = $region24
      $region23: #{projection_mlp_forward.3} parent=11 // pred_region
        _
      $region24: #{projection_mlp_forward.3} parent=11 // pred_fallthru
        _
      // Predicated region
      $region25: #{projection_mlp_forward.3} parent=11 // pred_check
        %p187 = pneg %p135
      $region26: #{projection_mlp_forward.3} parent=11 // pred_check_branch
        %189 = sbr.rel (%p187) target = $region28
      $region27: #{projection_mlp_forward.3} parent=11 // pred_region
        _
      $region28: #{projection_mlp_forward.3} parent=11 // pred_fallthru
        _
    $region12: #{projection_mlp_forward.3} parent=5 // pred_fallthru
      _
    %p190 = scmp.lt.s32.totalorder %s11, 2
    // Predicated region
    $region29: #{projection_mlp_forward.3} parent=5 // pred_check
      %p191 = pneg %p190
    $region30: #{projection_mlp_forward.3} parent=5 // pred_check_branch
      %193 = sbr.rel (%p191) target = $region32
    $region31: #{projection_mlp_forward.3} parent=5 // pred_region
      // Predicated region
      $region33: #{projection_mlp_forward.3} parent=31 // pred_check
        %p194 = pneg %p45
      $region34: #{projection_mlp_forward.3} parent=31 // pred_check_branch
        %196 = sbr.rel (%p194) target = $region36
      $region35: #{projection_mlp_forward.3} parent=31 // pred_region
        %p197 = scmp.lt.s32.totalorder %s18, 1
        %s198 = scalar_select %p197, %s18, 1
        %p199 = scmp.lt.s32.totalorder %s19, 0
        %s200 = scalar_select %p199, %s19, 0
        %s201 = smul.addr %s198, 16
        %s202 = sadd.s32 %s200, %s201
        %s203 = smul.addr %s202, 4
        %s204 = scalar_lea.vmem %s0, %s203
      $region36: #{projection_mlp_forward.3} parent=31 // pred_fallthru
        _
    $region32: #{projection_mlp_forward.3} parent=5 // pred_fallthru
      _
    %p205 = scmp.le.s32.totalorder 1, %s11
    %p206 = scmp.lt.s32.totalorder %s11, 3
    %p207 = pnand %p205, %p206
    %p208 = pneg %p207
    // Predicated region
    $region37: #{projection_mlp_forward.3} parent=5 // pred_check
      _
    $region38: #{projection_mlp_forward.3} parent=5 // pred_check_branch
      %210 = sbr.rel (%p207) target = $region40
    $region39: #{projection_mlp_forward.3} parent=5 // pred_region
      %s211 = ssub.s32 %s11, 1
      %p212 = scmp.lt.s32.totalorder %s20, 1
      %s213 = scalar_select %p212, %s20, 1
      %p214 = scmp.lt.s32.totalorder %s21, 0
      %s215 = scalar_select %p214, %s21, 0
      %s216 = smul.addr %s213, 16
      %s217 = sadd.s32 %s215, %s216
      %s218 = smul.addr %s217, 4
      %s219 = scalar_lea.vmem %s0, %s218
      %p220 = pneg %p51
      %p221 = pneg %p48
      %p222 = pneg %p72
      %p223 = pneg %p69
      %p224 = pneg %p93
      %p225 = pneg %p90
      %p226 = pneg %p114
      %p227 = pneg %p111
      %p228 = pneg %p135
      %p229 = pneg %p132
      %p230 = pneg %p163
      %p231 = pneg %p160
      %p232 = scmp.lt.s32.totalorder %s20, 1
      %s233 = scalar_select %p232, %s20, 1
      %p234 = scmp.lt.s32.totalorder %s21, 0
      %s235 = scalar_select %p234, %s21, 0
      %s236 = smul.addr %s233, 8
      %s237 = sadd.s32 %s235, %s236
      %s238 = smul.addr %s237, 8
      %s239 = scalar_lea.vmem %s5, %s238
      %p240 = scmp.lt.s32.totalorder %s20, 1
      %s241 = scalar_select %p240, %s20, 1
      %p242 = scmp.lt.s32.totalorder %s21, 0
      %s243 = scalar_select %p242, %s21, 0
      %s244 = smul.addr %s241, 16
      %s245 = sadd.s32 %s243, %s244
      %s246 = smul.addr %s245, 4
      %s247 = scalar_lea.vmem %s0, %s246
      %p248 = scmp.lt.s32.totalorder %s20, 1
      %s249 = scalar_select %p248, %s20, 1
      %p250 = scmp.lt.s32.totalorder %s21, 0
      %s251 = scalar_select %p250, %s21, 0
      %s252 = smul.addr %s249, 8
      %s253 = sadd.s32 %s251, %s252
      %s254 = smul.addr %s253, 8
      %s255 = scalar_lea.vmem %s5, %s254
      %v257 = vld [vmem:[%s247] sm:$0xf]
      %v258 = vld [vmem:[%s247 + $0x4] sm:$0xf]
      %v259 = vld [vmem:[%s247 + $0x8] sm:$0xf]
      %v260 = vld [vmem:[%s247 + $0xc] sm:$0xf]
      %v261 = vld [vmem:[%s247 + $0x10] sm:$0xf]
      %v262 = vld [vmem:[%s247 + $0x14] sm:$0xf]
      %v263 = vld [vmem:[%s247 + $0x18] sm:$0xf]
      %v264 = vld [vmem:[%s247 + $0x1c] sm:$0xf]
      %v265 = vld [vmem:[%s247 + $0x20] sm:$0xf]
      %v266 = vld [vmem:[%s247 + $0x24] sm:$0xf]
      %v267 = vld [vmem:[%s247 + $0x28] sm:$0xf]
      %v268 = vld [vmem:[%s247 + $0x2c] sm:$0xf]
      %v269 = vld [vmem:[%s247 + $0x30] sm:$0xf]
      %v270 = vld [vmem:[%s247 + $0x34] sm:$0xf]
      %v271 = vld [vmem:[%s247 + $0x38] sm:$0xf]
      %v272 = vld [vmem:[%s247 + $0x3c] sm:$0xf]
      %v273 = vld [vmem:[%s1] sm:$0xf]
      %v274 = vld [vmem:[%s1 + $0x4] sm:$0xf]
      %v275 = vld [vmem:[%s1 + $0x8] sm:$0xf]
      %v276 = vld [vmem:[%s1 + $0xc] sm:$0xf]
      %v277 = vld [vmem:[%s1 + $0x10] sm:$0xf]
      %v278 = vld [vmem:[%s1 + $0x14] sm:$0xf]
      %v279 = vld [vmem:[%s1 + $0x18] sm:$0xf]
      %v280 = vld [vmem:[%s1 + $0x1c] sm:$0xf]
      %v281 = vld [vmem:[%s1 + $0x20] sm:$0xf]
      %v282 = vld [vmem:[%s1 + $0x24] sm:$0xf]
      %v283 = vld [vmem:[%s1 + $0x28] sm:$0xf]
      %v284 = vld [vmem:[%s1 + $0x2c] sm:$0xf]
      %v285 = vld [vmem:[%s1 + $0x30] sm:$0xf]
      %v286 = vld [vmem:[%s1 + $0x34] sm:$0xf]
      %v287 = vld [vmem:[%s1 + $0x38] sm:$0xf]
      %v288 = vld [vmem:[%s1 + $0x3c] sm:$0xf]
      %v305 = vunpack.c.l.b16 %v273
      %v306 = vunpack.c.l.b16 %v274
      %v307 = vunpack.c.l.b16 %v275
      %v308 = vunpack.c.l.b16 %v276
      %v309 = vunpack.c.l.b16 %v277
      %v310 = vunpack.c.l.b16 %v278
      %v311 = vunpack.c.l.b16 %v279
      %v312 = vunpack.c.l.b16 %v280
      %v313 = vunpack.c.l.b16 %v281
      %v314 = vunpack.c.l.b16 %v282
      %v315 = vunpack.c.l.b16 %v283
      %v316 = vunpack.c.l.b16 %v284
      %v317 = vunpack.c.l.b16 %v285
      %v318 = vunpack.c.l.b16 %v286
      %v319 = vunpack.c.l.b16 %v287
      %v320 = vunpack.c.l.b16 %v288
      %v321 = vpack.c.b16 %v306, %v305
      %v322 = vpack.c.b16 %v308, %v307
      %v323 = vpack.c.b16 %v310, %v309
      %v324 = vpack.c.b16 %v312, %v311
      %v325 = vpack.c.b16 %v314, %v313
      %v326 = vpack.c.b16 %v316, %v315
      %v327 = vpack.c.b16 %v318, %v317
      %v328 = vpack.c.b16 %v320, %v319
      %v353 = vunpack.c.l.b16 %v257
      %v354 = vunpack.c.l.b16 %v258
      %v355 = vunpack.c.l.b16 %v259
      %v356 = vunpack.c.l.b16 %v260
      %v357 = vunpack.c.l.b16 %v261
      %v358 = vunpack.c.l.b16 %v262
      %v359 = vunpack.c.l.b16 %v263
      %v360 = vunpack.c.l.b16 %v264
      %v361 = vunpack.c.l.b16 %v265
      %v362 = vunpack.c.l.b16 %v266
      %v363 = vunpack.c.l.b16 %v267
      %v364 = vunpack.c.l.b16 %v268
      %v365 = vunpack.c.l.b16 %v269
      %v366 = vunpack.c.l.b16 %v270
      %v367 = vunpack.c.l.b16 %v271
      %v368 = vunpack.c.l.b16 %v272
      %v369 = vpack.c.b16 %v354, %v353
      %v370 = vpack.c.b16 %v356, %v355
      %v371 = vpack.c.b16 %v358, %v357
      %v372 = vpack.c.b16 %v360, %v359
      %v373 = vpack.c.b16 %v362, %v361
      %v374 = vpack.c.b16 %v364, %v363
      %v375 = vpack.c.b16 %v366, %v365
      %v376 = vpack.c.b16 %v368, %v367
      %385 = vmatprep.subr.bf16.mxu0 0
      %386 = vmatpush1.bf16.msra.mxu0 %v376
      %387 = vmatprep.subr.bf16.mxu0 0
      %388 = vmatpush1.bf16.msra.mxu0 %v375
      %389 = vmatprep.subr.bf16.mxu0 0
      %390 = vmatpush1.bf16.msra.mxu0 %v374
      %391 = vmatprep.subr.bf16.mxu0 0
      %392 = vmatpush1.bf16.msra.mxu0 %v373
      %393 = vmatprep.subr.bf16.mxu0 0
      %394 = vmatpush1.bf16.msra.mxu0 %v372
      %395 = vmatprep.subr.bf16.mxu0 0
      %396 = vmatpush1.bf16.msra.mxu0 %v371
      %397 = vmatprep.subr.bf16.mxu0 0
      %398 = vmatpush1.bf16.msra.mxu0 %v370
      %399 = vmatprep.subr.bf16.mxu0 0
      %400 = vmatpush1.bf16.msra.mxu0 %v369
      %401 = vmatprep.subr.bf16.mxu0 0
      %402 = vmatpush2.bf16.msra.mxu0 0
      %403 = vmatprep.subr.bf16.mxu0 0
      %404 = vmatpush2.bf16.msra.mxu0 0
      %405 = vmatprep.subr.bf16.mxu0 0
      %406 = vmatpush2.bf16.msra.mxu0 0
      %407 = vmatprep.subr.bf16.mxu0 0
      %408 = vmatpush2.bf16.msra.mxu0 0
      %409 = vmatprep.subr.bf16.mxu0 0
      %410 = vmatpush2.bf16.msra.mxu0 0
      %411 = vmatprep.subr.bf16.mxu0 0
      %412 = vmatpush2.bf16.msra.mxu0 0
      %413 = vmatprep.subr.bf16.mxu0 0
      %414 = vmatpush2.bf16.msra.mxu0 0
      %415 = vmatprep.subr.bf16.mxu0 0
      %416 = vmatpush2.bf16.msra.mxu0 0
      %417 = vmatprep.mubr.bf16.mxu0 0
      %418 = vmatmul.mubr.bf16.gmra.mxu0 %v321
      %v419 = vpop.f32.mrf.mxu0
      %v420 = vadd.f32 0.0, %v419
      %v421 = vpop.f32.mrf.mxu0
      %v422 = vpop.f32.mrf.mxu0
      %v423 = vadd.f32 0.0, %v422
      %v424 = vpop.f32.mrf.mxu0
      %425 = vmatprep.mubr.bf16.mxu0 0
      %426 = vmatmul.mubr.bf16.gmra.mxu0 %v322
      %v427 = vpop.f32.mrf.mxu0
      %v428 = vadd.f32 0.0, %v427
      %v429 = vpop.f32.mrf.mxu0
      %v430 = vpop.f32.mrf.mxu0
      %v431 = vadd.f32 0.0, %v430
      %v432 = vpop.f32.mrf.mxu0
      %433 = vmatprep.mubr.bf16.mxu0 0
      %434 = vmatmul.mubr.bf16.gmra.mxu0 %v323
      %v435 = vpop.f32.mrf.mxu0
      %v436 = vadd.f32 0.0, %v435
      %v437 = vpop.f32.mrf.mxu0
      %v438 = vpop.f32.mrf.mxu0
      %v439 = vadd.f32 0.0, %v438
      %v440 = vpop.f32.mrf.mxu0
      %441 = vmatprep.mubr.bf16.mxu0 0
      %442 = vmatmul.mubr.bf16.gmra.mxu0 %v324
      %v443 = vpop.f32.mrf.mxu0
      %v444 = vadd.f32 0.0, %v443
      %v445 = vpop.f32.mrf.mxu0
      %v446 = vpop.f32.mrf.mxu0
      %v447 = vadd.f32 0.0, %v446
      %v448 = vpop.f32.mrf.mxu0
      %449 = vmatprep.mubr.bf16.mxu0 0
      %450 = vmatmul.mubr.bf16.gmra.mxu0 %v325
      %v451 = vpop.f32.mrf.mxu0
      %v452 = vadd.f32 0.0, %v451
      %v453 = vpop.f32.mrf.mxu0
      %v454 = vpop.f32.mrf.mxu0
      %v455 = vadd.f32 0.0, %v454
      %v456 = vpop.f32.mrf.mxu0
      %457 = vmatprep.mubr.bf16.mxu0 0
      %458 = vmatmul.mubr.bf16.gmra.mxu0 %v326
      %v459 = vpop.f32.mrf.mxu0
      %v460 = vadd.f32 0.0, %v459
      %v461 = vpop.f32.mrf.mxu0
      %v462 = vpop.f32.mrf.mxu0
      %v463 = vadd.f32 0.0, %v462
      %v464 = vpop.f32.mrf.mxu0
      %465 = vmatprep.mubr.bf16.mxu0 0
      %466 = vmatmul.mubr.bf16.gmra.mxu0 %v327
      %v467 = vpop.f32.mrf.mxu0
      %v468 = vadd.f32 0.0, %v467
      %v469 = vpop.f32.mrf.mxu0
      %v470 = vpop.f32.mrf.mxu0
      %v471 = vadd.f32 0.0, %v470
      %v472 = vpop.f32.mrf.mxu0
      %473 = vmatprep.mubr.bf16.mxu0 0
      %474 = vmatmul.mubr.bf16.gmra.mxu0 %v328
      %v475 = vpop.f32.mrf.mxu0
      %v476 = vadd.f32 0.0, %v475
      %v477 = vpop.f32.mrf.mxu0
      %v478 = vpop.f32.mrf.mxu0
      %v479 = vadd.f32 0.0, %v478
      %v480 = vpop.f32.mrf.mxu0
      %481 = vdwg.mxu0
      %v482 = vld [vmem:[%s2] sm:$0xff]
      %v483 = vld [vmem:[%s2 + $0x8] sm:$0xff]
      %v484 = vld [vmem:[%s2 + $0x10] sm:$0xff]
      %v485 = vld [vmem:[%s2 + $0x18] sm:$0xff]
      %v486 = vld [vmem:[%s2 + $0x20] sm:$0xff]
      %v487 = vld [vmem:[%s2 + $0x28] sm:$0xff]
      %v488 = vld [vmem:[%s2 + $0x30] sm:$0xff]
      %v489 = vld [vmem:[%s2 + $0x38] sm:$0xff]
      %v490 = vld [vmem:[%s2 + $0x40] sm:$0xff]
      %v491 = vld [vmem:[%s2 + $0x48] sm:$0xff]
      %v492 = vld [vmem:[%s2 + $0x50] sm:$0xff]
      %v493 = vld [vmem:[%s2 + $0x58] sm:$0xff]
      %v494 = vld [vmem:[%s2 + $0x60] sm:$0xff]
      %v495 = vld [vmem:[%s2 + $0x68] sm:$0xff]
      %v496 = vld [vmem:[%s2 + $0x70] sm:$0xff]
      %v497 = vld [vmem:[%s2 + $0x78] sm:$0xff]
      %499 = vset.pattern.permute.xlu0 0
      %500 = vperm.xlu0 %499, %v482
      %v501 = vpop.permute.xlu0 %500
      %504 = vset.pattern.permute.xlu0 0
      %505 = vperm.xlu0 %504, %v483
      %v506 = vpop.permute.xlu0 %505
      %509 = vset.pattern.permute.xlu0 0
      %510 = vperm.xlu0 %509, %v484
      %v511 = vpop.permute.xlu0 %510
      %514 = vset.pattern.permute.xlu0 0
      %515 = vperm.xlu0 %514, %v485
      %v516 = vpop.permute.xlu0 %515
      %519 = vset.pattern.permute.xlu0 0
      %520 = vperm.xlu0 %519, %v486
      %v521 = vpop.permute.xlu0 %520
      %524 = vset.pattern.permute.xlu0 0
      %525 = vperm.xlu0 %524, %v487
      %v526 = vpop.permute.xlu0 %525
      %529 = vset.pattern.permute.xlu0 0
      %530 = vperm.xlu0 %529, %v488
      %v531 = vpop.permute.xlu0 %530
      %534 = vset.pattern.permute.xlu0 0
      %535 = vperm.xlu0 %534, %v489
      %v536 = vpop.permute.xlu0 %535
      %539 = vset.pattern.permute.xlu0 0
      %540 = vperm.xlu0 %539, %v490
      %v541 = vpop.permute.xlu0 %540
      %544 = vset.pattern.permute.xlu0 0
      %545 = vperm.xlu0 %544, %v491
      %v546 = vpop.permute.xlu0 %545
      %549 = vset.pattern.permute.xlu0 0
      %550 = vperm.xlu0 %549, %v492
      %v551 = vpop.permute.xlu0 %550
      %554 = vset.pattern.permute.xlu0 0
      %555 = vperm.xlu0 %554, %v493
      %v556 = vpop.permute.xlu0 %555
      %559 = vset.pattern.permute.xlu0 0
      %560 = vperm.xlu0 %559, %v494
      %v561 = vpop.permute.xlu0 %560
      %564 = vset.pattern.permute.xlu0 0
      %565 = vperm.xlu0 %564, %v495
      %v566 = vpop.permute.xlu0 %565
      %569 = vset.pattern.permute.xlu0 0
      %570 = vperm.xlu0 %569, %v496
      %v571 = vpop.permute.xlu0 %570
      %574 = vset.pattern.permute.xlu0 0
      %575 = vperm.xlu0 %574, %v497
      %v576 = vpop.permute.xlu0 %575
      %v578 = vmul.f32 %v420, %v501
      %v579 = vmul.f32 %v423, %v506
      %v580 = vmul.f32 %v428, %v511
      %v581 = vmul.f32 %v431, %v516
      %v582 = vmul.f32 %v436, %v521
      %v583 = vmul.f32 %v439, %v526
      %v584 = vmul.f32 %v444, %v531
      %v585 = vmul.f32 %v447, %v536
      %v586 = vmul.f32 %v452, %v541
      %v587 = vmul.f32 %v455, %v546
      %v588 = vmul.f32 %v460, %v551
      %v589 = vmul.f32 %v463, %v556
      %v590 = vmul.f32 %v468, %v561
      %v591 = vmul.f32 %v471, %v566
      %v592 = vmul.f32 %v476, %v571
      %v593 = vmul.f32 %v479, %v576
      %594 = vset.pattern.permute.xlu0 1
      %595 = vperm.xlu0 %594, %v482
      %v596 = vpop.permute.xlu0 %595
      %598 = vset.pattern.permute.xlu0 1
      %599 = vperm.xlu0 %598, %v483
      %v600 = vpop.permute.xlu0 %599
      %602 = vset.pattern.permute.xlu0 1
      %603 = vperm.xlu0 %602, %v484
      %v604 = vpop.permute.xlu0 %603
      %606 = vset.pattern.permute.xlu0 1
      %607 = vperm.xlu0 %606, %v485
      %v608 = vpop.permute.xlu0 %607
      %610 = vset.pattern.permute.xlu0 1
      %611 = vperm.xlu0 %610, %v486
      %v612 = vpop.permute.xlu0 %611
      %614 = vset.pattern.permute.xlu0 1
      %615 = vperm.xlu0 %614, %v487
      %v616 = vpop.permute.xlu0 %615
      %618 = vset.pattern.permute.xlu0 1
      %619 = vperm.xlu0 %618, %v488
      %v620 = vpop.permute.xlu0 %619
      %622 = vset.pattern.permute.xlu0 1
      %623 = vperm.xlu0 %622, %v489
      %v624 = vpop.permute.xlu0 %623
      %626 = vset.pattern.permute.xlu0 1
      %627 = vperm.xlu0 %626, %v490
      %v628 = vpop.permute.xlu0 %627
      %630 = vset.pattern.permute.xlu0 1
      %631 = vperm.xlu0 %630, %v491
      %v632 = vpop.permute.xlu0 %631
      %634 = vset.pattern.permute.xlu0 1
      %635 = vperm.xlu0 %634, %v492
      %v636 = vpop.permute.xlu0 %635
      %638 = vset.pattern.permute.xlu0 1
      %639 = vperm.xlu0 %638, %v493
      %v640 = vpop.permute.xlu0 %639
      %642 = vset.pattern.permute.xlu0 1
      %643 = vperm.xlu0 %642, %v494
      %v644 = vpop.permute.xlu0 %643
      %646 = vset.pattern.permute.xlu0 1
      %647 = vperm.xlu0 %646, %v495
      %v648 = vpop.permute.xlu0 %647
      %650 = vset.pattern.permute.xlu0 1
      %651 = vperm.xlu0 %650, %v496
      %v652 = vpop.permute.xlu0 %651
      %654 = vset.pattern.permute.xlu0 1
      %655 = vperm.xlu0 %654, %v497
      %v656 = vpop.permute.xlu0 %655
      %v658 = vadd.f32 %v578, %v596
      %v659 = vadd.f32 %v579, %v600
      %v660 = vadd.f32 %v580, %v604
      %v661 = vadd.f32 %v581, %v608
      %v662 = vadd.f32 %v582, %v612
      %v663 = vadd.f32 %v583, %v616
      %v664 = vadd.f32 %v584, %v620
      %v665 = vadd.f32 %v585, %v624
      %v666 = vadd.f32 %v586, %v628
      %v667 = vadd.f32 %v587, %v632
      %v668 = vadd.f32 %v588, %v636
      %v669 = vadd.f32 %v589, %v640
      %v670 = vadd.f32 %v590, %v644
      %v671 = vadd.f32 %v591, %v648
      %v672 = vadd.f32 %v592, %v652
      %v673 = vadd.f32 %v593, %v656
      %v674 = vmax.f32 %v658, 0.0
      %v675 = vmax.f32 %v659, 0.0
      %v676 = vmax.f32 %v660, 0.0
      %v677 = vmax.f32 %v661, 0.0
      %v678 = vmax.f32 %v662, 0.0
      %v679 = vmax.f32 %v663, 0.0
      %v680 = vmax.f32 %v664, 0.0
      %v681 = vmax.f32 %v665, 0.0
      %v682 = vmax.f32 %v666, 0.0
      %v683 = vmax.f32 %v667, 0.0
      %v684 = vmax.f32 %v668, 0.0
      %v685 = vmax.f32 %v669, 0.0
      %v686 = vmax.f32 %v670, 0.0
      %v687 = vmax.f32 %v671, 0.0
      %v688 = vmax.f32 %v672, 0.0
      %v689 = vmax.f32 %v673, 0.0
      %v690 = vld [vmem:[%s3] sm:$0xf]
      %v691 = vld [vmem:[%s3 + $0x4] sm:$0xf]
      %v692 = vld [vmem:[%s3 + $0x8] sm:$0xf]
      %v693 = vld [vmem:[%s3 + $0xc] sm:$0xf]
      %v694 = vld [vmem:[%s3 + $0x10] sm:$0xf]
      %v695 = vld [vmem:[%s3 + $0x14] sm:$0xf]
      %v696 = vld [vmem:[%s3 + $0x18] sm:$0xf]
      %v697 = vld [vmem:[%s3 + $0x1c] sm:$0xf]
      %v698 = vpack.c.bf16 %v675, %v674
      %v699 = vpack.c.bf16 %v677, %v676
      %v700 = vpack.c.bf16 %v679, %v678
      %v701 = vpack.c.bf16 %v681, %v680
      %v702 = vpack.c.bf16 %v683, %v682
      %v703 = vpack.c.bf16 %v685, %v684
      %v704 = vpack.c.bf16 %v687, %v686
      %v705 = vpack.c.bf16 %v689, %v688
      %v706 = vld [vmem:[%s4] sm:$0xff]
      %v707 = vld [vmem:[%s4 + $0x8] sm:$0xff]
      %v708 = vld [vmem:[%s4 + $0x10] sm:$0xff]
      %v709 = vld [vmem:[%s4 + $0x18] sm:$0xff]
      %v710 = vld [vmem:[%s4 + $0x20] sm:$0xff]
      %v711 = vld [vmem:[%s4 + $0x28] sm:$0xff]
      %v712 = vld [vmem:[%s4 + $0x30] sm:$0xff]
      %v713 = vld [vmem:[%s4 + $0x38] sm:$0xff]
      %715 = vset.pattern.permute.xlu0 0
      %716 = vperm.xlu0 %715, %v706
      %v717 = vpop.permute.xlu0 %716
      %720 = vset.pattern.permute.xlu0 0
      %721 = vperm.xlu0 %720, %v707
      %v722 = vpop.permute.xlu0 %721
      %725 = vset.pattern.permute.xlu0 0
      %726 = vperm.xlu0 %725, %v708
      %v727 = vpop.permute.xlu0 %726
      %730 = vset.pattern.permute.xlu0 0
      %731 = vperm.xlu0 %730, %v709
      %v732 = vpop.permute.xlu0 %731
      %735 = vset.pattern.permute.xlu0 0
      %736 = vperm.xlu0 %735, %v710
      %v737 = vpop.permute.xlu0 %736
      %740 = vset.pattern.permute.xlu0 0
      %741 = vperm.xlu0 %740, %v711
      %v742 = vpop.permute.xlu0 %741
      %745 = vset.pattern.permute.xlu0 0
      %746 = vperm.xlu0 %745, %v712
      %v747 = vpop.permute.xlu0 %746
      %750 = vset.pattern.permute.xlu0 0
      %751 = vperm.xlu0 %750, %v713
      %v752 = vpop.permute.xlu0 %751
      %v762 = vunpack.c.l.b16 %v690
      %v763 = vunpack.c.l.b16 %v691
      %v764 = vunpack.c.l.b16 %v692
      %v765 = vunpack.c.l.b16 %v693
      %v766 = vunpack.c.l.b16 %v694
      %v767 = vunpack.c.l.b16 %v695
      %v768 = vunpack.c.l.b16 %v696
      %v769 = vunpack.c.l.b16 %v697
      %v770 = vpack.c.b16 %v763, %v762
      %v771 = vpack.c.b16 %v765, %v764
      %v772 = vpack.c.b16 %v767, %v766
      %v773 = vpack.c.b16 %v769, %v768
      %778 = vmatprep.subr.bf16.mxu0 0
      %779 = vmatpush1.bf16.msra.mxu0 %v705
      %780 = vmatprep.subr.bf16.mxu0 0
      %781 = vmatpush1.bf16.msra.mxu0 %v704
      %782 = vmatprep.subr.bf16.mxu0 0
      %783 = vmatpush1.bf16.msra.mxu0 %v703
      %784 = vmatprep.subr.bf16.mxu0 0
      %785 = vmatpush1.bf16.msra.mxu0 %v702
      %786 = vmatprep.subr.bf16.mxu0 0
      %787 = vmatpush1.bf16.msra.mxu0 %v701
      %788 = vmatprep.subr.bf16.mxu0 0
      %789 = vmatpush1.bf16.msra.mxu0 %v700
      %790 = vmatprep.subr.bf16.mxu0 0
      %791 = vmatpush1.bf16.msra.mxu0 %v699
      %792 = vmatprep.subr.bf16.mxu0 0
      %793 = vmatpush1.bf16.msra.mxu0 %v698
      %794 = vmatprep.subr.bf16.mxu0 0
      %795 = vmatpush2.bf16.msra.mxu0 0
      %796 = vmatprep.subr.bf16.mxu0 0
      %797 = vmatpush2.bf16.msra.mxu0 0
      %798 = vmatprep.subr.bf16.mxu0 0
      %799 = vmatpush2.bf16.msra.mxu0 0
      %800 = vmatprep.subr.bf16.mxu0 0
      %801 = vmatpush2.bf16.msra.mxu0 0
      %802 = vmatprep.subr.bf16.mxu0 0
      %803 = vmatpush2.bf16.msra.mxu0 0
      %804 = vmatprep.subr.bf16.mxu0 0
      %805 = vmatpush2.bf16.msra.mxu0 0
      %806 = vmatprep.subr.bf16.mxu0 0
      %807 = vmatpush2.bf16.msra.mxu0 0
      %808 = vmatprep.subr.bf16.mxu0 0
      %809 = vmatpush2.bf16.msra.mxu0 0
      %810 = vmatprep.mubr.bf16.mxu0 0
      %811 = vmatmul.mubr.bf16.gmra.mxu0 %v770
      %v812 = vpop.f32.mrf.mxu0
      %v813 = vadd.f32 %v717, %v812
      %v814 = vpop.f32.mrf.mxu0
      %v815 = vpop.f32.mrf.mxu0
      %v816 = vadd.f32 %v722, %v815
      %v817 = vpop.f32.mrf.mxu0
      %818 = vmatprep.mubr.bf16.mxu0 0
      %819 = vmatmul.mubr.bf16.gmra.mxu0 %v771
      %v820 = vpop.f32.mrf.mxu0
      %v821 = vadd.f32 %v727, %v820
      %v822 = vpop.f32.mrf.mxu0
      %v823 = vpop.f32.mrf.mxu0
      %v824 = vadd.f32 %v732, %v823
      %v825 = vpop.f32.mrf.mxu0
      %826 = vmatprep.mubr.bf16.mxu0 0
      %827 = vmatmul.mubr.bf16.gmra.mxu0 %v772
      %v828 = vpop.f32.mrf.mxu0
      %v829 = vadd.f32 %v737, %v828
      %v830 = vpop.f32.mrf.mxu0
      %v831 = vpop.f32.mrf.mxu0
      %v832 = vadd.f32 %v742, %v831
      %v833 = vpop.f32.mrf.mxu0
      %834 = vmatprep.mubr.bf16.mxu0 0
      %835 = vmatmul.mubr.bf16.gmra.mxu0 %v773
      %v836 = vpop.f32.mrf.mxu0
      %v837 = vadd.f32 %v747, %v836
      %v838 = vpop.f32.mrf.mxu0
      %v839 = vpop.f32.mrf.mxu0
      %v840 = vadd.f32 %v752, %v839
      %v841 = vpop.f32.mrf.mxu0
      %842 = vdwg.mxu0
      %843 = vst [vmem:[%s255] sm:$0xff] %v813
      %844 = vst [vmem:[%s255 + $0x8] sm:$0xff] %v816
      %845 = vst [vmem:[%s255 + $0x10] sm:$0xff] %v821
      %846 = vst [vmem:[%s255 + $0x18] sm:$0xff] %v824
      %847 = vst [vmem:[%s255 + $0x20] sm:$0xff] %v829
      %848 = vst [vmem:[%s255 + $0x28] sm:$0xff] %v832
      %849 = vst [vmem:[%s255 + $0x30] sm:$0xff] %v837
      %850 = vst [vmem:[%s255 + $0x38] sm:$0xff] %v840
      %p851 = scmp.lt.s32.totalorder %s20, 1
      %s852 = scalar_select %p851, %s20, 1
      %p853 = scmp.lt.s32.totalorder %s21, 0
      %s854 = scalar_select %p853, %s21, 0
      %s855 = smul.addr %s852, 8
      %s856 = sadd.s32 %s854, %s855
      %s857 = smul.addr %s856, 8
      %s858 = scalar_lea.vmem %s5, %s857
      // Predicated region
      $region41: #{projection_mlp_forward.3} parent=39 // pred_check
        %p859 = pneg %p160
      $region42: #{projection_mlp_forward.3} parent=39 // pred_check_branch
        %861 = sbr.rel (%p859) target = $region44
      $region43: #{projection_mlp_forward.3} parent=39 // pred_region
        _
      $region44: #{projection_mlp_forward.3} parent=39 // pred_fallthru
        _
    $region40: #{projection_mlp_forward.3} parent=5 // pred_fallthru
      _
    %p862 = scmp.le.s32.totalorder 2, %s11
    // Predicated region
    $region45: #{projection_mlp_forward.3} parent=5 // pred_check
      %p863 = pneg %p862
    $region46: #{projection_mlp_forward.3} parent=5 // pred_check_branch
      %865 = sbr.rel (%p863) target = $region48
    $region47: #{projection_mlp_forward.3} parent=5 // pred_region
      %s866 = ssub.s32 %s11, 2
      // Predicated region
      $region49: #{projection_mlp_forward.3} parent=47 // pred_check
        %p867 = pneg %p166
      $region50: #{projection_mlp_forward.3} parent=47 // pred_check_branch
        %869 = sbr.rel (%p867) target = $region52
      $region51: #{projection_mlp_forward.3} parent=47 // pred_region
        %p870 = scmp.lt.s32.totalorder %s22, 1
        %s871 = scalar_select %p870, %s22, 1
        %p872 = scmp.lt.s32.totalorder %s23, 0
        %s873 = scalar_select %p872, %s23, 0
        %s874 = smul.addr %s871, 8
        %s875 = sadd.s32 %s873, %s874
        %s876 = smul.addr %s875, 8
        %s877 = scalar_lea.vmem %s5, %s876
      $region52: #{projection_mlp_forward.3} parent=47 // pred_fallthru
        _
    $region48: #{projection_mlp_forward.3} parent=5 // pred_fallthru
      _
  $region6: #{projection_mlp_forward.3} parent=0 // loop_footer
    %s15 = sadd.s32 1, %s11
  $region7: #{projection_mlp_forward.3} parent=0 // loop_footer_branch
    %10 = sbr.rel target = $region3
  $region8: #{projection_mlp_forward.3} parent=0 // loop_exit
    _

</llo_original>
